<compile_context>
chip_gen: v7x
topology: tpu7x:2x2x1
jax: 0.10.0
libtpu: 0.0.40
codegen_flags: <defaults>
</compile_context>

<pallas_src>
import jax
import jax.numpy as jnp
from jax import lax
from jax.experimental import pallas as pl
from jax.experimental.pallas import tpu as pltpu

_TILE_SUBLANES = 8     # sublanes per block (one int32 vreg row-group)
_TILE_LANES = 512      # lanes per block; multiple of 128 -> unmasked vst
                       # (8, 512) int32 = 16 KiB/buffer; comfortably inside
                       # v7x's 64 MiB VMEM even double-buffered.


def _map_id_kernel(ids_ref, idxs_ref, keys_ref, mapped_ref):
    """Lookup: mapped[i] = idxs[j] where ids[j] == keys[i], else -1.

    ids_ref / idxs_ref : SMEM (K,) int32   (scalar-prefetched table)
    keys_ref           : VMEM (8, TILE_LANES) int32
    mapped_ref         : VMEM (8, TILE_LANES) int32
    """
    keys = keys_ref[...]                               # (8, L) int32
    acc0 = jnp.full_like(keys, -1)                     # missing-key sentinel

    def body(j, acc):
        # Scalar SMEM reads broadcast against the whole key vreg block:
        # one VPU compare + select per table entry, no lane padding.
        return jnp.where(keys == ids_ref[j], idxs_ref[j], acc)

    k = ids_ref.shape[0]
    acc = lax.fori_loop(0, k, body, acc0, unroll=True)
    mapped_ref[...] = acc


@jax.jit
def _run_kernel(keys2d, ids, idxs):
    rows, lanes = keys2d.shape
    grid = (rows // _TILE_SUBLANES,)
    blk = (_TILE_SUBLANES, lanes)
    return pl.pallas_call(
        _map_id_kernel,
        out_shape=jax.ShapeDtypeStruct((rows, lanes), jnp.int32),
        grid_spec=pltpu.PrefetchScalarGridSpec(
            num_scalar_prefetch=2,              # ids, idxs -> SMEM
            grid=grid,
            in_specs=[pl.BlockSpec(blk, lambda i, ids_s, idxs_s: (i, 0))],
            out_specs=pl.BlockSpec(blk, lambda i, ids_s, idxs_s: (i, 0)),
        ),
        compiler_params=pltpu.CompilerParams(
            dimension_semantics=("parallel",)),
    )(ids, idxs, keys2d)


def explicit_map_id_score_list(raw_keys, raw_values, id2index):
    """JAX/Pallas equivalent of ExplicitMapIDScoreList.forward."""
    # Dense lookup table from the python dict (host-side glue).
    ids = jnp.asarray(list(id2index.keys()), dtype=jnp.int32)
    idxs = jnp.asarray(list(id2index.values()), dtype=jnp.int32)

    n = raw_keys.shape[0]
    tile = _TILE_SUBLANES * _TILE_LANES
    pad_n = max(tile, pl.cdiv(n, tile) * tile)

    # Lane-dense key layout: pad to a whole number of (8, 512) tiles.
    # Padding slots produce -1 and are sliced off below.
    keys_flat = jnp.full((pad_n,), jnp.int32(-2147483647), dtype=jnp.int32)
    keys_flat = keys_flat.at[:n].set(raw_keys.astype(jnp.int32))
    keys2d = keys_flat.reshape(pad_n // _TILE_LANES, _TILE_LANES)

    mapped2d = _run_kernel(keys2d, ids, idxs)
    mapped = mapped2d.reshape(pad_n)[:n]

    # TODO(synk): torch.long is int64; TPU Pallas emits int32 (identical values
    # for indices < 2^31; cast outside if jax_enable_x64 is on).
    # raw_values is returned untouched -- no kernel copy needed.
    return mapped, raw_values


if __name__ == "__main__":
    key = jax.random.PRNGKey(0)
    k_ids, k_keys, k_vals = jax.random.split(key, 3)

    # Deterministic synthetic id->index map (small dict, as the module implies).
    num_ids = 16
    raw_id_list = [int(1000 + 7 * i) for i in range(num_ids)]
    id2index = {rid: i for i, rid in enumerate(raw_id_list)}

    # Small inputs: 8 keys drawn (with repetition) from the known ids.
    n_keys = 8
    pick = jax.random.randint(k_keys, (n_keys,), 0, num_ids)
    raw_keys = jnp.asarray(raw_id_list, dtype=jnp.int32)[pick]
    raw_values = jax.random.normal(k_vals, (n_keys,), dtype=jnp.float32)

    mapped_keys, out_values = explicit_map_id_score_list(
        raw_keys, raw_values, id2index)
    jax.block_until_ready((mapped_keys, out_values))

    # Correctness check against the pure-Python reference semantics.
    ref = jnp.asarray([id2index[int(x)] for x in raw_keys], dtype=jnp.int32)
    assert bool(jnp.all(mapped_keys == ref))
    assert bool(jnp.all(out_values == raw_values))

    print("KERNEL_OK")
</pallas_src>

<mosaic_0001>
module attributes {stable_mosaic.version = 11 : i64} {
  func.func @_map_id_kernel(%arg0: i32, %arg1: memref<16xi32, #tpu.memory_space<smem>>, %arg2: memref<16xi32, #tpu.memory_space<smem>>, %arg3: memref<8x512xi32, #tpu.memory_space<vmem>>, %arg4: memref<8x512xi32, #tpu.memory_space<vmem>>) attributes {dimension_semantics = [#tpu.dimension_semantics<parallel>], iteration_bounds = array<i64: 1>, scalar_prefetch = 2 : i64, scratch_operands = 0 : i64, tpu.core_type = #tpu.core_type<tc>, window_params = [{transform_indices = @transform_0, window_bounds = array<i64: 8, 512>}, {transform_indices = @transform_1, window_bounds = array<i64: 8, 512>}]} {
    %c0 = arith.constant 0 : index
    %c0_0 = arith.constant 0 : index
    %0 = vector.load %arg3[%c0, %c0_0] : memref<8x512xi32, #tpu.memory_space<vmem>>, vector<8x512xi32>
    %c-1_i32 = arith.constant -1 : i32
    %1 = vector.broadcast %c-1_i32 : i32 to vector<8x512xi32>
    %c0_i32 = arith.constant 0 : i32
    %2 = arith.index_cast %c0_i32 : i32 to index
    %3 = memref.load %arg1[%2] : memref<16xi32, #tpu.memory_space<smem>>
    %4 = vector.broadcast %3 : i32 to vector<8x512xi32>
    %5 = arith.cmpi eq, %0, %4 : vector<8x512xi32>
    %6 = arith.index_cast %c0_i32 : i32 to index
    %7 = memref.load %arg2[%6] : memref<16xi32, #tpu.memory_space<smem>>
    %8 = vector.broadcast %7 : i32 to vector<8x512xi32>
    %9 = arith.select %5, %8, %1 : vector<8x512xi1>, vector<8x512xi32>
    %c1_i32 = arith.constant 1 : i32
    %10 = arith.index_cast %c1_i32 : i32 to index
    %11 = memref.load %arg1[%10] : memref<16xi32, #tpu.memory_space<smem>>
    %12 = vector.broadcast %11 : i32 to vector<8x512xi32>
    %13 = arith.cmpi eq, %0, %12 : vector<8x512xi32>
    %14 = arith.index_cast %c1_i32 : i32 to index
    %15 = memref.load %arg2[%14] : memref<16xi32, #tpu.memory_space<smem>>
    %16 = vector.broadcast %15 : i32 to vector<8x512xi32>
    %17 = arith.select %13, %16, %9 : vector<8x512xi1>, vector<8x512xi32>
    %c2_i32 = arith.constant 2 : i32
    %18 = arith.index_cast %c2_i32 : i32 to index
    %19 = memref.load %arg1[%18] : memref<16xi32, #tpu.memory_space<smem>>
    %20 = vector.broadcast %19 : i32 to vector<8x512xi32>
    %21 = arith.cmpi eq, %0, %20 : vector<8x512xi32>
    %22 = arith.index_cast %c2_i32 : i32 to index
    %23 = memref.load %arg2[%22] : memref<16xi32, #tpu.memory_space<smem>>
    %24 = vector.broadcast %23 : i32 to vector<8x512xi32>
    %25 = arith.select %21, %24, %17 : vector<8x512xi1>, vector<8x512xi32>
    %c3_i32 = arith.constant 3 : i32
    %26 = arith.index_cast %c3_i32 : i32 to index
    %27 = memref.load %arg1[%26] : memref<16xi32, #tpu.memory_space<smem>>
    %28 = vector.broadcast %27 : i32 to vector<8x512xi32>
    %29 = arith.cmpi eq, %0, %28 : vector<8x512xi32>
    %30 = arith.index_cast %c3_i32 : i32 to index
    %31 = memref.load %arg2[%30] : memref<16xi32, #tpu.memory_space<smem>>
    %32 = vector.broadcast %31 : i32 to vector<8x512xi32>
    %33 = arith.select %29, %32, %25 : vector<8x512xi1>, vector<8x512xi32>
    %c4_i32 = arith.constant 4 : i32
    %34 = arith.index_cast %c4_i32 : i32 to index
    %35 = memref.load %arg1[%34] : memref<16xi32, #tpu.memory_space<smem>>
    %36 = vector.broadcast %35 : i32 to vector<8x512xi32>
    %37 = arith.cmpi eq, %0, %36 : vector<8x512xi32>
    %38 = arith.index_cast %c4_i32 : i32 to index
    %39 = memref.load %arg2[%38] : memref<16xi32, #tpu.memory_space<smem>>
    %40 = vector.broadcast %39 : i32 to vector<8x512xi32>
    %41 = arith.select %37, %40, %33 : vector<8x512xi1>, vector<8x512xi32>
    %c5_i32 = arith.constant 5 : i32
    %42 = arith.index_cast %c5_i32 : i32 to index
    %43 = memref.load %arg1[%42] : memref<16xi32, #tpu.memory_space<smem>>
    %44 = vector.broadcast %43 : i32 to vector<8x512xi32>
    %45 = arith.cmpi eq, %0, %44 : vector<8x512xi32>
    %46 = arith.index_cast %c5_i32 : i32 to index
    %47 = memref.load %arg2[%46] : memref<16xi32, #tpu.memory_space<smem>>
    %48 = vector.broadcast %47 : i32 to vector<8x512xi32>
    %49 = arith.select %45, %48, %41 : vector<8x512xi1>, vector<8x512xi32>
    %c6_i32 = arith.constant 6 : i32
    %50 = arith.index_cast %c6_i32 : i32 to index
    %51 = memref.load %arg1[%50] : memref<16xi32, #tpu.memory_space<smem>>
    %52 = vector.broadcast %51 : i32 to vector<8x512xi32>
    %53 = arith.cmpi eq, %0, %52 : vector<8x512xi32>
    %54 = arith.index_cast %c6_i32 : i32 to index
    %55 = memref.load %arg2[%54] : memref<16xi32, #tpu.memory_space<smem>>
    %56 = vector.broadcast %55 : i32 to vector<8x512xi32>
    %57 = arith.select %53, %56, %49 : vector<8x512xi1>, vector<8x512xi32>
    %c7_i32 = arith.constant 7 : i32
    %58 = arith.index_cast %c7_i32 : i32 to index
    %59 = memref.load %arg1[%58] : memref<16xi32, #tpu.memory_space<smem>>
    %60 = vector.broadcast %59 : i32 to vector<8x512xi32>
    %61 = arith.cmpi eq, %0, %60 : vector<8x512xi32>
    %62 = arith.index_cast %c7_i32 : i32 to index
    %63 = memref.load %arg2[%62] : memref<16xi32, #tpu.memory_space<smem>>
    %64 = vector.broadcast %63 : i32 to vector<8x512xi32>
    %65 = arith.select %61, %64, %57 : vector<8x512xi1>, vector<8x512xi32>
    %c8_i32 = arith.constant 8 : i32
    %66 = arith.index_cast %c8_i32 : i32 to index
    %67 = memref.load %arg1[%66] : memref<16xi32, #tpu.memory_space<smem>>
    %68 = vector.broadcast %67 : i32 to vector<8x512xi32>
    %69 = arith.cmpi eq, %0, %68 : vector<8x512xi32>
    %70 = arith.index_cast %c8_i32 : i32 to index
    %71 = memref.load %arg2[%70] : memref<16xi32, #tpu.memory_space<smem>>
    %72 = vector.broadcast %71 : i32 to vector<8x512xi32>
    %73 = arith.select %69, %72, %65 : vector<8x512xi1>, vector<8x512xi32>
    %c9_i32 = arith.constant 9 : i32
    %74 = arith.index_cast %c9_i32 : i32 to index
    %75 = memref.load %arg1[%74] : memref<16xi32, #tpu.memory_space<smem>>
    %76 = vector.broadcast %75 : i32 to vector<8x512xi32>
    %77 = arith.cmpi eq, %0, %76 : vector<8x512xi32>
    %78 = arith.index_cast %c9_i32 : i32 to index
    %79 = memref.load %arg2[%78] : memref<16xi32, #tpu.memory_space<smem>>
    %80 = vector.broadcast %79 : i32 to vector<8x512xi32>
    %81 = arith.select %77, %80, %73 : vector<8x512xi1>, vector<8x512xi32>
    %c10_i32 = arith.constant 10 : i32
    %82 = arith.index_cast %c10_i32 : i32 to index
    %83 = memref.load %arg1[%82] : memref<16xi32, #tpu.memory_space<smem>>
    %84 = vector.broadcast %83 : i32 to vector<8x512xi32>
    %85 = arith.cmpi eq, %0, %84 : vector<8x512xi32>
    %86 = arith.index_cast %c10_i32 : i32 to index
    %87 = memref.load %arg2[%86] : memref<16xi32, #tpu.memory_space<smem>>
    %88 = vector.broadcast %87 : i32 to vector<8x512xi32>
    %89 = arith.select %85, %88, %81 : vector<8x512xi1>, vector<8x512xi32>
    %c11_i32 = arith.constant 11 : i32
    %90 = arith.index_cast %c11_i32 : i32 to index
    %91 = memref.load %arg1[%90] : memref<16xi32, #tpu.memory_space<smem>>
    %92 = vector.broadcast %91 : i32 to vector<8x512xi32>
    %93 = arith.cmpi eq, %0, %92 : vector<8x512xi32>
    %94 = arith.index_cast %c11_i32 : i32 to index
    %95 = memref.load %arg2[%94] : memref<16xi32, #tpu.memory_space<smem>>
    %96 = vector.broadcast %95 : i32 to vector<8x512xi32>
    %97 = arith.select %93, %96, %89 : vector<8x512xi1>, vector<8x512xi32>
    %c12_i32 = arith.constant 12 : i32
    %98 = arith.index_cast %c12_i32 : i32 to index
    %99 = memref.load %arg1[%98] : memref<16xi32, #tpu.memory_space<smem>>
    %100 = vector.broadcast %99 : i32 to vector<8x512xi32>
    %101 = arith.cmpi eq, %0, %100 : vector<8x512xi32>
    %102 = arith.index_cast %c12_i32 : i32 to index
    %103 = memref.load %arg2[%102] : memref<16xi32, #tpu.memory_space<smem>>
    %104 = vector.broadcast %103 : i32 to vector<8x512xi32>
    %105 = arith.select %101, %104, %97 : vector<8x512xi1>, vector<8x512xi32>
    %c13_i32 = arith.constant 13 : i32
    %106 = arith.index_cast %c13_i32 : i32 to index
    %107 = memref.load %arg1[%106] : memref<16xi32, #tpu.memory_space<smem>>
    %108 = vector.broadcast %107 : i32 to vector<8x512xi32>
    %109 = arith.cmpi eq, %0, %108 : vector<8x512xi32>
    %110 = arith.index_cast %c13_i32 : i32 to index
    %111 = memref.load %arg2[%110] : memref<16xi32, #tpu.memory_space<smem>>
    %112 = vector.broadcast %111 : i32 to vector<8x512xi32>
    %113 = arith.select %109, %112, %105 : vector<8x512xi1>, vector<8x512xi32>
    %c14_i32 = arith.constant 14 : i32
    %114 = arith.index_cast %c14_i32 : i32 to index
    %115 = memref.load %arg1[%114] : memref<16xi32, #tpu.memory_space<smem>>
    %116 = vector.broadcast %115 : i32 to vector<8x512xi32>
    %117 = arith.cmpi eq, %0, %116 : vector<8x512xi32>
    %118 = arith.index_cast %c14_i32 : i32 to index
    %119 = memref.load %arg2[%118] : memref<16xi32, #tpu.memory_space<smem>>
    %120 = vector.broadcast %119 : i32 to vector<8x512xi32>
    %121 = arith.select %117, %120, %113 : vector<8x512xi1>, vector<8x512xi32>
    %c15_i32 = arith.constant 15 : i32
    %122 = arith.index_cast %c15_i32 : i32 to index
    %123 = memref.load %arg1[%122] : memref<16xi32, #tpu.memory_space<smem>>
    %124 = vector.broadcast %123 : i32 to vector<8x512xi32>
    %125 = arith.cmpi eq, %0, %124 : vector<8x512xi32>
    %126 = arith.index_cast %c15_i32 : i32 to index
    %127 = memref.load %arg2[%126] : memref<16xi32, #tpu.memory_space<smem>>
    %128 = vector.broadcast %127 : i32 to vector<8x512xi32>
    %129 = arith.select %125, %128, %121 : vector<8x512xi1>, vector<8x512xi32>
    %c16_i32 = arith.constant 16 : i32
    %c0_1 = arith.constant 0 : index
    %c0_2 = arith.constant 0 : index
    %130 = vector.load %arg4[%c0_1, %c0_2] : memref<8x512xi32, #tpu.memory_space<vmem>>, vector<8x512xi32>
    tpu.vector_store %arg4[%c0_1, %c0_2], %129 {strides = array<i32>} : memref<8x512xi32, #tpu.memory_space<vmem>>, vector<8x512xi32>,
    return
  }
  func.func @transform_0(%arg0: i32, %arg1: memref<16xi32, #tpu.memory_space<smem>>, %arg2: memref<16xi32, #tpu.memory_space<smem>>) -> (i32, i32) {
    %c0_i32 = arith.constant 0 : i32
    %c0_i32_0 = arith.constant 0 : i32
    return %arg0, %c0_i32 : i32, i32
  }
  func.func @transform_1(%arg0: i32, %arg1: memref<16xi32, #tpu.memory_space<smem>>, %arg2: memref<16xi32, #tpu.memory_space<smem>>) -> (i32, i32) {
    %c0_i32 = arith.constant 0 : i32
    %c0_i32_0 = arith.constant 0 : i32
    return %arg0, %c0_i32 : i32, i32
  }
}

</mosaic_0001>

<llo_original>
// kernel: _run_kernel.1
$region0: #{_run_kernel.1}
  #allocation0 [shape = 'u32[]', space=smem, size = 0x4, offset = 0x4, fixed_abs, tag = 'smem constant byte address 0x4 - core index']
  #allocation1 [shape = 'u32[144,128]{1,0:T(1,128)}', space=vmem, size = 0x12000, scoped, tag = 'internal scratch']
  #allocation2 [shape = 's32[1]{0}', space=sflag, size = 0x4, scoped, tag = 'scoped memory for _run_kernel.1']
  #allocation3 [shape = 'u8[512]{0}', space=smem, size = 0x200, scoped, tag = 'prefetched SMEM operand 0']
  #allocation4 [shape = 'u8[512]{0}', space=smem, size = 0x200, scoped, tag = 'prefetched SMEM operand 1']
  %s0 = inlined_call_operand.vmem [shape: s32[16], index: 0, kind: input, shape index: {}]
  %s1 = inlined_call_operand.vmem [shape: s32[16], index: 1, kind: input, shape index: {}]
  %s2 = inlined_call_operand.hbm [shape: s32[8,512], index: 2, kind: input, shape index: {}]
  %s3 = inlined_call_operand.hbm [shape: s32[8,512], index: 3, kind: output, shape index: {}]
  %s4 = sld [smem:[#allocation0]]
  $region18: #{_run_kernel.1} parent=0
    _
  %s6 = ssub.s32 1, %s4
  %s7 = scalar_select 0, %s6, %s4
  %s8 = sshll.u32 %s0, 4
  %s9 = int_to_ptr.vmem [resolvable:$true] %s8
  %11 = dma.vmem_to_smem %s9, 16, [#allocation3], [#allocation2]
  %s12 = sshll.u32 %s1, 4
  %s13 = int_to_ptr.vmem [resolvable:$true] %s12
  %15 = dma.vmem_to_smem %s13, 16, [#allocation4], [#allocation2]
  %16 = dma.done [#allocation2], 32
  %17 = sfence
  $region1: #{_run_kernel.1} parent=0
    #allocation5 [shape = 'u8[16384]{0}', space=vmem, size = 0x4000, scoped, tag = 'input window, operand 2, single buffered']
    #allocation6 [shape = 's32[1]{0}', space=sflag, size = 0x4, scoped, tag = 'scoped memory for _run_kernel.1']
    #allocation7 [shape = 's32[1]{0}', space=sflag, size = 0x4, scoped, tag = 'scoped memory for _run_kernel.1']
    #allocation8 [shape = 'u8[16384]{0}', space=vmem, size = 0x4000, scoped, tag = 'output window, operand 0, single buffered']
    %18 = vsyncpa [#allocation6], 0
    %19 = vsyncpa [#allocation7], 0
    // Predicated region
    $region2: #{_run_kernel.1} parent=1 // pred_check
      _
    $region3: #{_run_kernel.1} parent=1 // pred_check_branch
      %21 = sbr.rel (0) target = $region5
    $region4: #{_run_kernel.1} parent=1 // pred_region
      %s23 = ssub.s32 512, 512
      %24 = vsyncadd [#allocation6], %s23
      %s26 = sshll.u32 [#allocation5], 4
      %s27 = int_to_ptr.vmem [resolvable:$true] %s26
      %29 = dma.hbm_to_vmem [thread:$0]  %s2, 512, %s27, [#allocation6]
    $region5: #{_run_kernel.1} parent=1 // pred_fallthru
      _
    // Predicated region
    $region6: #{_run_kernel.1} parent=1 // pred_check
      _
    $region7: #{_run_kernel.1} parent=1 // pred_check_branch
      %31 = sbr.rel (0) target = $region9
    $region8: #{_run_kernel.1} parent=1 // pred_region
      %32 = dma.done [#allocation6], 512
    $region9: #{_run_kernel.1} parent=1 // pred_fallthru
      _
    %v33 = vld [vmem:[#allocation5] sm:$0xff]
    %v34 = vld [vmem:[#allocation5 + $0x8] sm:$0xff]
    %v35 = vld [vmem:[#allocation5 + $0x10] sm:$0xff]
    %v36 = vld [vmem:[#allocation5 + $0x18] sm:$0xff]
    %s37 = sld [smem:[#allocation3]]
    %v38 = vstv %s37
    %vm39 = vcmp.eq.s32.totalorder %v33, %v38
    %vm40 = vcmp.eq.s32.totalorder %v34, %v38
    %vm41 = vcmp.eq.s32.totalorder %v35, %v38
    %vm42 = vcmp.eq.s32.totalorder %v36, %v38
    %s43 = sld [smem:[#allocation4]]
    %v44 = vstv %s43
    %v45 = vsel %vm39, %v44, 4294967295
    %v46 = vsel %vm40, %v44, 4294967295
    %v47 = vsel %vm41, %v44, 4294967295
    %v48 = vsel %vm42, %v44, 4294967295
    %s49 = sld [smem:[#allocation3 + $0x1]]
    %v50 = vstv %s49
    %vm51 = vcmp.eq.s32.totalorder %v33, %v50
    %vm52 = vcmp.eq.s32.totalorder %v34, %v50
    %vm53 = vcmp.eq.s32.totalorder %v35, %v50
    %vm54 = vcmp.eq.s32.totalorder %v36, %v50
    %s55 = sld [smem:[#allocation4 + $0x1]]
    %v56 = vstv %s55
    %v57 = vsel %vm51, %v56, %v45
    %v58 = vsel %vm52, %v56, %v46
    %v59 = vsel %vm53, %v56, %v47
    %v60 = vsel %vm54, %v56, %v48
    %s61 = sld [smem:[#allocation3 + $0x2]]
    %v62 = vstv %s61
    %vm63 = vcmp.eq.s32.totalorder %v33, %v62
    %vm64 = vcmp.eq.s32.totalorder %v34, %v62
    %vm65 = vcmp.eq.s32.totalorder %v35, %v62
    %vm66 = vcmp.eq.s32.totalorder %v36, %v62
    %s67 = sld [smem:[#allocation4 + $0x2]]
    %v68 = vstv %s67
    %v69 = vsel %vm63, %v68, %v57
    %v70 = vsel %vm64, %v68, %v58
    %v71 = vsel %vm65, %v68, %v59
    %v72 = vsel %vm66, %v68, %v60
    %s73 = sld [smem:[#allocation3 + $0x3]]
    %v74 = vstv %s73
    %vm75 = vcmp.eq.s32.totalorder %v33, %v74
    %vm76 = vcmp.eq.s32.totalorder %v34, %v74
    %vm77 = vcmp.eq.s32.totalorder %v35, %v74
    %vm78 = vcmp.eq.s32.totalorder %v36, %v74
    %s79 = sld [smem:[#allocation4 + $0x3]]
    %v80 = vstv %s79
    %v81 = vsel %vm75, %v80, %v69
    %v82 = vsel %vm76, %v80, %v70
    %v83 = vsel %vm77, %v80, %v71
    %v84 = vsel %vm78, %v80, %v72
    %s85 = sld [smem:[#allocation3 + $0x4]]
    %v86 = vstv %s85
    %vm87 = vcmp.eq.s32.totalorder %v33, %v86
    %vm88 = vcmp.eq.s32.totalorder %v34, %v86
    %vm89 = vcmp.eq.s32.totalorder %v35, %v86
    %vm90 = vcmp.eq.s32.totalorder %v36, %v86
    %s91 = sld [smem:[#allocation4 + $0x4]]
    %v92 = vstv %s91
    %v93 = vsel %vm87, %v92, %v81
    %v94 = vsel %vm88, %v92, %v82
    %v95 = vsel %vm89, %v92, %v83
    %v96 = vsel %vm90, %v92, %v84
    %s97 = sld [smem:[#allocation3 + $0x5]]
    %v98 = vstv %s97
    %vm99 = vcmp.eq.s32.totalorder %v33, %v98
    %vm100 = vcmp.eq.s32.totalorder %v34, %v98
    %vm101 = vcmp.eq.s32.totalorder %v35, %v98
    %vm102 = vcmp.eq.s32.totalorder %v36, %v98
    %s103 = sld [smem:[#allocation4 + $0x5]]
    %v104 = vstv %s103
    %v105 = vsel %vm99, %v104, %v93
    %v106 = vsel %vm100, %v104, %v94
    %v107 = vsel %vm101, %v104, %v95
    %v108 = vsel %vm102, %v104, %v96
    %s109 = sld [smem:[#allocation3 + $0x6]]
    %v110 = vstv %s109
    %vm111 = vcmp.eq.s32.totalorder %v33, %v110
    %vm112 = vcmp.eq.s32.totalorder %v34, %v110
    %vm113 = vcmp.eq.s32.totalorder %v35, %v110
    %vm114 = vcmp.eq.s32.totalorder %v36, %v110
    %s115 = sld [smem:[#allocation4 + $0x6]]
    %v116 = vstv %s115
    %v117 = vsel %vm111, %v116, %v105
    %v118 = vsel %vm112, %v116, %v106
    %v119 = vsel %vm113, %v116, %v107
    %v120 = vsel %vm114, %v116, %v108
    %s121 = sld [smem:[#allocation3 + $0x7]]
    %v122 = vstv %s121
    %vm123 = vcmp.eq.s32.totalorder %v33, %v122
    %vm124 = vcmp.eq.s32.totalorder %v34, %v122
    %vm125 = vcmp.eq.s32.totalorder %v35, %v122
    %vm126 = vcmp.eq.s32.totalorder %v36, %v122
    %s127 = sld [smem:[#allocation4 + $0x7]]
    %v128 = vstv %s127
    %v129 = vsel %vm123, %v128, %v117
    %v130 = vsel %vm124, %v128, %v118
    %v131 = vsel %vm125, %v128, %v119
    %v132 = vsel %vm126, %v128, %v120
    %s133 = sld [smem:[#allocation3 + $0x8]]
    %v134 = vstv %s133
    %vm135 = vcmp.eq.s32.totalorder %v33, %v134
    %vm136 = vcmp.eq.s32.totalorder %v34, %v134
    %vm137 = vcmp.eq.s32.totalorder %v35, %v134
    %vm138 = vcmp.eq.s32.totalorder %v36, %v134
    %s139 = sld [smem:[#allocation4 + $0x8]]
    %v140 = vstv %s139
    %v141 = vsel %vm135, %v140, %v129
    %v142 = vsel %vm136, %v140, %v130
    %v143 = vsel %vm137, %v140, %v131
    %v144 = vsel %vm138, %v140, %v132
    %s145 = sld [smem:[#allocation3 + $0x9]]
    %v146 = vstv %s145
    %vm147 = vcmp.eq.s32.totalorder %v33, %v146
    %vm148 = vcmp.eq.s32.totalorder %v34, %v146
    %vm149 = vcmp.eq.s32.totalorder %v35, %v146
    %vm150 = vcmp.eq.s32.totalorder %v36, %v146
    %s151 = sld [smem:[#allocation4 + $0x9]]
    %v152 = vstv %s151
    %v153 = vsel %vm147, %v152, %v141
    %v154 = vsel %vm148, %v152, %v142
    %v155 = vsel %vm149, %v152, %v143
    %v156 = vsel %vm150, %v152, %v144
    %s157 = sld [smem:[#allocation3 + $0xa]]
    %v158 = vstv %s157
    %vm159 = vcmp.eq.s32.totalorder %v33, %v158
    %vm160 = vcmp.eq.s32.totalorder %v34, %v158
    %vm161 = vcmp.eq.s32.totalorder %v35, %v158
    %vm162 = vcmp.eq.s32.totalorder %v36, %v158
    %s163 = sld [smem:[#allocation4 + $0xa]]
    %v164 = vstv %s163
    %v165 = vsel %vm159, %v164, %v153
    %v166 = vsel %vm160, %v164, %v154
    %v167 = vsel %vm161, %v164, %v155
    %v168 = vsel %vm162, %v164, %v156
    %s169 = sld [smem:[#allocation3 + $0xb]]
    %v170 = vstv %s169
    %vm171 = vcmp.eq.s32.totalorder %v33, %v170
    %vm172 = vcmp.eq.s32.totalorder %v34, %v170
    %vm173 = vcmp.eq.s32.totalorder %v35, %v170
    %vm174 = vcmp.eq.s32.totalorder %v36, %v170
    %s175 = sld [smem:[#allocation4 + $0xb]]
    %v176 = vstv %s175
    %v177 = vsel %vm171, %v176, %v165
    %v178 = vsel %vm172, %v176, %v166
    %v179 = vsel %vm173, %v176, %v167
    %v180 = vsel %vm174, %v176, %v168
    %s181 = sld [smem:[#allocation3 + $0xc]]
    %v182 = vstv %s181
    %vm183 = vcmp.eq.s32.totalorder %v33, %v182
    %vm184 = vcmp.eq.s32.totalorder %v34, %v182
    %vm185 = vcmp.eq.s32.totalorder %v35, %v182
    %vm186 = vcmp.eq.s32.totalorder %v36, %v182
    %s187 = sld [smem:[#allocation4 + $0xc]]
    %v188 = vstv %s187
    %v189 = vsel %vm183, %v188, %v177
    %v190 = vsel %vm184, %v188, %v178
    %v191 = vsel %vm185, %v188, %v179
    %v192 = vsel %vm186, %v188, %v180
    %s193 = sld [smem:[#allocation3 + $0xd]]
    %v194 = vstv %s193
    %vm195 = vcmp.eq.s32.totalorder %v33, %v194
    %vm196 = vcmp.eq.s32.totalorder %v34, %v194
    %vm197 = vcmp.eq.s32.totalorder %v35, %v194
    %vm198 = vcmp.eq.s32.totalorder %v36, %v194
    %s199 = sld [smem:[#allocation4 + $0xd]]
    %v200 = vstv %s199
    %v201 = vsel %vm195, %v200, %v189
    %v202 = vsel %vm196, %v200, %v190
    %v203 = vsel %vm197, %v200, %v191
    %v204 = vsel %vm198, %v200, %v192
    %s205 = sld [smem:[#allocation3 + $0xe]]
    %v206 = vstv %s205
    %vm207 = vcmp.eq.s32.totalorder %v33, %v206
    %vm208 = vcmp.eq.s32.totalorder %v34, %v206
    %vm209 = vcmp.eq.s32.totalorder %v35, %v206
    %vm210 = vcmp.eq.s32.totalorder %v36, %v206
    %s211 = sld [smem:[#allocation4 + $0xe]]
    %v212 = vstv %s211
    %v213 = vsel %vm207, %v212, %v201
    %v214 = vsel %vm208, %v212, %v202
    %v215 = vsel %vm209, %v212, %v203
    %v216 = vsel %vm210, %v212, %v204
    %s217 = sld [smem:[#allocation3 + $0xf]]
    %v218 = vstv %s217
    %vm219 = vcmp.eq.s32.totalorder %v33, %v218
    %vm220 = vcmp.eq.s32.totalorder %v34, %v218
    %vm221 = vcmp.eq.s32.totalorder %v35, %v218
    %vm222 = vcmp.eq.s32.totalorder %v36, %v218
    %s223 = sld [smem:[#allocation4 + $0xf]]
    %v224 = vstv %s223
    %v225 = vsel %vm219, %v224, %v213
    %v226 = vsel %vm220, %v224, %v214
    %v227 = vsel %vm221, %v224, %v215
    %v228 = vsel %vm222, %v224, %v216
    %229 = vst [vmem:[#allocation8] sm:$0xff] %v225
    %230 = vst [vmem:[#allocation8 + $0x8] sm:$0xff] %v226
    %231 = vst [vmem:[#allocation8 + $0x10] sm:$0xff] %v227
    %232 = vst [vmem:[#allocation8 + $0x18] sm:$0xff] %v228
    // Predicated region
    $region10: #{_run_kernel.1} parent=1 // pred_check
      _
    $region11: #{_run_kernel.1} parent=1 // pred_check_branch
      %234 = sbr.rel (0) target = $region13
    $region12: #{_run_kernel.1} parent=1 // pred_region
      %s236 = ssub.s32 512, 512
      %237 = vsyncadd [#allocation7], %s236
      %s239 = sshll.u32 [#allocation8], 4
      %s240 = int_to_ptr.vmem [resolvable:$true] %s239
      %242 = dma.vmem_to_hbm [thread:$0]  %s240, 512, %s3, [#allocation7]
    $region13: #{_run_kernel.1} parent=1 // pred_fallthru
      _
    // Predicated region
    $region14: #{_run_kernel.1} parent=1 // pred_check
      _
    $region15: #{_run_kernel.1} parent=1 // pred_check_branch
      %244 = sbr.rel (0) target = $region17
    $region16: #{_run_kernel.1} parent=1 // pred_region
      %245 = dma.done [#allocation7], 512
    $region17: #{_run_kernel.1} parent=1 // pred_fallthru
      _
    %246 = vsyncpa [#allocation6], 1
    %247 = vsyncpa [#allocation7], 1

</llo_original>
